<compile_context>
chip_gen: v7x
topology: tpu7x:2x2x1
jax: 0.10.0
libtpu: 0.0.40
codegen_flags: <defaults>
</compile_context>

<pallas_src>
import jax
import jax.numpy as jnp
from jax.experimental import pallas as pl
from jax.experimental.pallas import tpu as pltpu


def _star_relu_kernel(s_ref, b_ref, x_ref, o_ref):
    # s_ref, b_ref: (1,) f32 scalars in SMEM.  x_ref/o_ref: (block_rows, lw) VMEM tiles.
    s = s_ref[0]
    b = b_ref[0]
    x = x_ref[...].astype(jnp.float32)
    r = jnp.maximum(x, 0.0)               # relu
    o_ref[...] = (s * (r * r) + b).astype(o_ref.dtype)


def star_relu(x, scale, bias, *, max_block_bytes=8 * 1024 * 1024):
    """StarReLU forward.  x: any shape; scale, bias: shape (1,) learnable scalars."""
    orig_shape = x.shape
    orig_dtype = x.dtype
    itemsize = jnp.dtype(orig_dtype).itemsize
    n = x.size
    xf = x.reshape(-1)

    # Robustness: SMEM scalars always f32 regardless of parameter dtype.
    s32 = jnp.asarray(scale, jnp.float32).reshape((1,))
    b32 = jnp.asarray(bias, jnp.float32).reshape((1,))

    # Tail-pad only if the flat length is not a multiple of 128 lanes
    # (never happens for the conv-stage shapes this module sees in practice).
    # TODO(synk): if ragged sizes become common, mask the tail in-kernel
    # instead of this host-side pad + slice (each is an extra HBM pass).
    pad = (-n) % 128
    if pad:
        xf = jnp.pad(xf, (0, pad))
    n_pad = n + pad

    # Largest lane width (multiple of 128) dividing n_pad -> lane-dense slab.
    lw = 128
    for cand in (8192, 4096, 2048, 1024, 512, 256, 128):
        if n_pad % cand == 0:
            lw = cand
            break
    rows = n_pad // lw
    x2 = xf.reshape(rows, lw)
    slab_bytes = n_pad * itemsize

    # Sublane granularity per dtype (vreg packing): f32->8, bf16/f16->16, int8/fp8->32.
    sub = max(8, 32 // itemsize)

    if rows <= sub:
        # Tiny slab: single full-extent block (always legal).
        block_rows = rows
    else:
        # ~8 MiB blocks, but keep >= 8 grid steps when the slab allows it so the
        # pipeline actually overlaps DMAs and v7x's two TCs both get work.
        # Never shrink below ~512 KiB so the ~0.35us/step overhead stays small.
        desired_steps = 8
        min_block_bytes = 512 * 1024
        block_bytes = min(max_block_bytes, slab_bytes)
        if slab_bytes // block_bytes < desired_steps:
            block_bytes = max(min_block_bytes, slab_bytes // desired_steps)
        block_rows = max(sub, (block_bytes // (lw * itemsize)) // sub * sub)
        block_rows = min(block_rows, rows)
        # Prefer a block that divides rows evenly (no ragged last tile -> no
        # masked stores); bounded shrink in units of `sub`, else accept ragged.
        if block_rows < rows and rows % block_rows != 0:
            br = block_rows
            while br > sub and rows % br != 0:
                br -= sub
            if rows % br == 0:
                block_rows = br

    grid = (pl.cdiv(rows, block_rows),)

    out = pl.pallas_call(
        _star_relu_kernel,
        out_shape=jax.ShapeDtypeStruct((rows, lw), orig_dtype),
        grid_spec=pltpu.PrefetchScalarGridSpec(
            num_scalar_prefetch=0,
            grid=grid,
            in_specs=[
                pl.BlockSpec(memory_space=pltpu.MemorySpace.SMEM),  # scale
                pl.BlockSpec(memory_space=pltpu.MemorySpace.SMEM),  # bias
                pl.BlockSpec((block_rows, lw), lambda i: (i, 0)),   # x tile
            ],
            out_specs=pl.BlockSpec((block_rows, lw), lambda i: (i, 0)),
        ),
        compiler_params=pltpu.CompilerParams(
            dimension_semantics=("parallel",),
            # 4 x 8 MiB double-buffered in+out = 32 MiB; 48 MiB leaves compiler
            # scratch headroom and is safe on v7x's 64 MiB physical VMEM while
            # lifting v5e's 16 MiB / v6e's 32 MiB scoped defaults.
            vmem_limit_bytes=48 * 1024 * 1024,
        ),
        cost_estimate=pl.CostEstimate(
            flops=4 * n,
            transcendentals=0,
            bytes_accessed=2 * n * itemsize,
        ),
    )(s32, b32, x2)

    out = out.reshape(-1)
    if pad:
        out = out[:n]
    return out.reshape(orig_shape)


def star_relu_ref(x, scale, bias):
    xf = x.astype(jnp.float32)
    r = jnp.maximum(xf, 0.0)
    y = scale.astype(jnp.float32) * (r * r) + bias.astype(jnp.float32)
    return y.astype(x.dtype)


if __name__ == "__main__":
    key = jax.random.PRNGKey(0)
    kx, ks, kb, k2, k3 = jax.random.split(key, 5)

    # Module __init__ defaults: scale = 1.0 * ones(1), bias = 0.0 * ones(1).
    # Perturb deterministically so both learnable params are exercised.
    scale = jnp.ones((1,), jnp.float32) + 0.1 * jax.random.normal(ks, (1,), jnp.float32)
    bias = jnp.zeros((1,), jnp.float32) + 0.1 * jax.random.normal(kb, (1,), jnp.float32)

    # 1) NCHW like the PyTorch module would see from a conv stage (single block).
    x = jax.random.normal(kx, (2, 4, 16, 16), dtype=jnp.float32)
    out = jax.block_until_ready(star_relu(x, scale, bias))
    ref = star_relu_ref(x, scale, bias)
    assert out.shape == x.shape
    assert jnp.allclose(out, ref, atol=1e-6, rtol=1e-6), "f32 small mismatch"

    # 2) Larger f32 tensor to exercise the multi-block (>=2 steps) grid path.
    x2 = jax.random.normal(k2, (2, 32, 64, 64), dtype=jnp.float32)
    out2 = jax.block_until_ready(star_relu(x2, scale, bias))
    ref2 = star_relu_ref(x2, scale, bias)
    assert jnp.allclose(out2, ref2, atol=1e-6, rtol=1e-6), "f32 multi-block mismatch"

    # 3) bf16 tensor to exercise the dtype-aware (16-sublane) rounding path.
    x3 = jax.random.normal(k3, (4, 16, 32, 64), dtype=jnp.float32).astype(jnp.bfloat16)
    out3 = jax.block_until_ready(star_relu(x3, scale, bias))
    ref3 = star_relu_ref(x3, scale, bias)
    assert jnp.allclose(out3.astype(jnp.float32), ref3.astype(jnp.float32),
                        atol=2e-2, rtol=2e-2), "bf16 mismatch"

    print("KERNEL_OK")
</pallas_src>

<mosaic_0001>
module attributes {stable_mosaic.version = 11 : i64} {
  func.func @_star_relu_kernel(%arg0: i32, %arg1: memref<1xf32, #tpu.memory_space<smem>>, %arg2: memref<1xf32, #tpu.memory_space<smem>>, %arg3: memref<1x2048xf32, #tpu.memory_space<vmem>>, %arg4: memref<1x2048xf32, #tpu.memory_space<vmem>>) attributes {dimension_semantics = [#tpu.dimension_semantics<parallel>], iteration_bounds = array<i64: 1>, scalar_prefetch = 0 : i64, scratch_operands = 0 : i64, tpu.core_type = #tpu.core_type<tc>, window_params = [{transform_indices = @transform_0, window_bounds = array<i64: 1>}, {transform_indices = @transform_1, window_bounds = array<i64: 1>}, {transform_indices = @transform_2, window_bounds = array<i64: 1, 2048>}, {transform_indices = @transform_3, window_bounds = array<i64: 1, 2048>}]} {
    %c0 = arith.constant 0 : index
    %0 = memref.load %arg1[%c0] : memref<1xf32, #tpu.memory_space<smem>>
    %c0_0 = arith.constant 0 : index
    %1 = memref.load %arg2[%c0_0] : memref<1xf32, #tpu.memory_space<smem>>
    %c0_1 = arith.constant 0 : index
    %c0_2 = arith.constant 0 : index
    %2 = vector.load %arg3[%c0_1, %c0_2] : memref<1x2048xf32, #tpu.memory_space<vmem>>, vector<1x2048xf32>
    %cst = arith.constant 0.000000e+00 : f32
    %3 = vector.broadcast %cst : f32 to vector<1x2048xf32>
    %4 = arith.maximumf %2, %3 : vector<1x2048xf32>
    %5 = arith.mulf %4, %4 : vector<1x2048xf32>
    %6 = vector.broadcast %0 : f32 to vector<1x2048xf32>
    %7 = arith.mulf %6, %5 : vector<1x2048xf32>
    %8 = vector.broadcast %1 : f32 to vector<1x2048xf32>
    %9 = arith.addf %7, %8 : vector<1x2048xf32>
    %c0_3 = arith.constant 0 : index
    %c0_4 = arith.constant 0 : index
    %10 = vector.load %arg4[%c0_3, %c0_4] : memref<1x2048xf32, #tpu.memory_space<vmem>>, vector<1x2048xf32>
    tpu.vector_store %arg4[%c0_3, %c0_4], %9 {strides = array<i32>} : memref<1x2048xf32, #tpu.memory_space<vmem>>, vector<1x2048xf32>,
    return
  }
  func.func @transform_0(%arg0: i32) -> i32 {
    %c0_i32 = arith.constant 0 : i32
    %c0_i32_0 = arith.constant 0 : i32
    return %c0_i32 : i32
  }
  func.func @transform_1(%arg0: i32) -> i32 {
    %c0_i32 = arith.constant 0 : i32
    %c0_i32_0 = arith.constant 0 : i32
    return %c0_i32 : i32
  }
  func.func @transform_2(%arg0: i32) -> (i32, i32) {
    %c0_i32 = arith.constant 0 : i32
    %c0_i32_0 = arith.constant 0 : i32
    return %arg0, %c0_i32 : i32, i32
  }
  func.func @transform_3(%arg0: i32) -> (i32, i32) {
    %c0_i32 = arith.constant 0 : i32
    %c0_i32_0 = arith.constant 0 : i32
    return %arg0, %c0_i32 : i32, i32
  }
}

</mosaic_0001>

<llo_original>
// kernel: tpu_custom_call.1
$region0: #{tpu_custom_call.1}
  #allocation0 [shape = 'u32[]', space=smem, size = 0x4, offset = 0x4, fixed_abs, tag = 'smem constant byte address 0x4 - core index']
  #allocation1 [shape = 'u32[144,128]{1,0:T(1,128)}', space=vmem, size = 0x12000, scoped, tag = 'internal scratch']
  #allocation2 [shape = 'f32[1]{0:T(128)S(6)}', space=smem, size = 0x200, scoped, tag = 'scoped memory for tpu_custom_call.1']
  #allocation3 [shape = 'f32[1]{0:T(128)S(6)}', space=smem, size = 0x200, scoped, tag = 'scoped memory for tpu_custom_call.1']
  %s0 = inlined_call_operand.<no memory space> [shape: f32[1], index: 0, kind: input, shape index: {}]
  %s1 = inlined_call_operand.<no memory space> [shape: f32[1], index: 1, kind: input, shape index: {}]
  %s2 = inlined_call_operand.hbm [shape: f32[1,2048], index: 2, kind: input, shape index: {}]
  %s3 = inlined_call_operand.hbm [shape: f32[1,2048], index: 3, kind: output, shape index: {}]
  %s4 = sld [smem:[#allocation0]]
  $region26: #{tpu_custom_call.1} parent=0
    _
  %s6 = ssub.s32 1, %s4
  %s7 = scalar_select 0, %s6, %s4
  %8 = sst [smem:[#allocation2]] %s0
  %9 = sst [smem:[#allocation3]] %s1
  $region1: #{tpu_custom_call.1} parent=0
    #allocation4 [shape = 'u8[8192]{0}', space=vmem, size = 0x2000, scoped, tag = 'input window, operand 2, single buffered']
    #allocation5 [shape = 's32[1]{0}', space=sflag, size = 0x4, scoped, tag = 'scoped memory for tpu_custom_call.1']
    #allocation6 [shape = 's32[1]{0}', space=sflag, size = 0x4, scoped, tag = 'scoped memory for tpu_custom_call.1']
    #allocation7 [shape = 'u8[8192]{0}', space=vmem, size = 0x2000, scoped, tag = 'output window, operand 0, single buffered']
    %10 = vsyncpa [#allocation5], 0
    %11 = vsyncpa [#allocation6], 0
    // Predicated region
    $region2: #{tpu_custom_call.1} parent=1 // pred_check
      _
    $region3: #{tpu_custom_call.1} parent=1 // pred_check_branch
      %13 = sbr.rel (0) target = $region5
    $region4: #{tpu_custom_call.1} parent=1 // pred_region
      _
    $region5: #{tpu_custom_call.1} parent=1 // pred_fallthru
      _
    // Predicated region
    $region6: #{tpu_custom_call.1} parent=1 // pred_check
      _
    $region7: #{tpu_custom_call.1} parent=1 // pred_check_branch
      %15 = sbr.rel (0) target = $region9
    $region8: #{tpu_custom_call.1} parent=1 // pred_region
      _
    $region9: #{tpu_custom_call.1} parent=1 // pred_fallthru
      _
    // Predicated region
    $region10: #{tpu_custom_call.1} parent=1 // pred_check
      _
    $region11: #{tpu_custom_call.1} parent=1 // pred_check_branch
      %17 = sbr.rel (0) target = $region13
    $region12: #{tpu_custom_call.1} parent=1 // pred_region
      %s19 = ssub.s32 256, 256
      %20 = vsyncadd [#allocation5], %s19
      %s22 = sshll.u32 [#allocation4], 4
      %s23 = int_to_ptr.vmem [resolvable:$true] %s22
      %25 = dma.hbm_to_vmem [thread:$0]  %s2, 256, %s23, [#allocation5]
    $region13: #{tpu_custom_call.1} parent=1 // pred_fallthru
      _
    // Predicated region
    $region14: #{tpu_custom_call.1} parent=1 // pred_check
      _
    $region15: #{tpu_custom_call.1} parent=1 // pred_check_branch
      %27 = sbr.rel (0) target = $region17
    $region16: #{tpu_custom_call.1} parent=1 // pred_region
      %28 = dma.done [#allocation5], 256
    $region17: #{tpu_custom_call.1} parent=1 // pred_fallthru
      _
    %s29 = sld [smem:[#allocation2]]
    %s30 = sld [smem:[#allocation3]]
    %v31 = vld [vmem:[#allocation4] sm:$0xff]
    %v32 = vld [vmem:[#allocation4 + $0x8] sm:$0xff]
    %v33 = vmax.f32 %v31, 0.0
    %v34 = vmax.f32 %v32, 0.0
    %v35 = vmul.f32 %v33, %v33
    %v36 = vmul.f32 %v34, %v34
    %v37 = vstv %s29
    %v38 = vmul.f32 %v37, %v35
    %v39 = vmul.f32 %v37, %v36
    %v40 = vstv %s30
    %v41 = vadd.f32 %v38, %v40
    %v42 = vadd.f32 %v39, %v40
    %43 = vst [vmem:[#allocation7] sm:$0xff] %v41
    %44 = vst [vmem:[#allocation7 + $0x8] sm:$0xff] %v42
    // Predicated region
    $region18: #{tpu_custom_call.1} parent=1 // pred_check
      _
    $region19: #{tpu_custom_call.1} parent=1 // pred_check_branch
      %46 = sbr.rel (0) target = $region21
    $region20: #{tpu_custom_call.1} parent=1 // pred_region
      %s48 = ssub.s32 256, 256
      %49 = vsyncadd [#allocation6], %s48
      %s51 = sshll.u32 [#allocation7], 4
      %s52 = int_to_ptr.vmem [resolvable:$true] %s51
      %54 = dma.vmem_to_hbm [thread:$0]  %s52, 256, %s3, [#allocation6]
    $region21: #{tpu_custom_call.1} parent=1 // pred_fallthru
      _
    // Predicated region
    $region22: #{tpu_custom_call.1} parent=1 // pred_check
      _
    $region23: #{tpu_custom_call.1} parent=1 // pred_check_branch
      %56 = sbr.rel (0) target = $region25
    $region24: #{tpu_custom_call.1} parent=1 // pred_region
      %57 = dma.done [#allocation6], 256
    $region25: #{tpu_custom_call.1} parent=1 // pred_fallthru
      _
    %58 = vsyncpa [#allocation5], 1
    %59 = vsyncpa [#allocation6], 1

</llo_original>
